<compile_context>
chip_gen: v5e
topology: v5e:2x2
jax: 0.10.0
libtpu: 0.0.40
codegen_flags: <defaults>
</compile_context>

<pallas_src>
import functools

import jax
import jax.numpy as jnp
import numpy as np
from jax.experimental import pallas as pl
from jax.experimental.pallas import tpu as pltpu


def _conv2d_block_kernel(*refs, K, W, B, HW, cin_pad, norm, activation,
                         eps, negative_slope, has_bias):
    # refs = (x, w, masks, [bias], out, im2col_scratch)
    x_ref, w_ref, m_ref = refs[0], refs[1], refs[2]
    i = 3
    b_ref = None
    if has_bias:
        b_ref = refs[i]
        i += 1
    o_ref, col_ref = refs[i], refs[i + 1]

    LANES = B * HW
    pad = K // 2
    x = x_ref[...]                         # (cin_pad, B*HW), lane-dense

    # --- im2col in VMEM ----------------------------------------------------
    # Each tap = roll of the flattened image (XLU) * precomputed 0/1 border
    # mask (exact zero padding, also kills cross-image wrap when B > 1),
    # written into its own sublane band of the scratch.
    # NOTE: on v5e (single vst slot) the accumulate-over-taps form may be
    # preferable; benchmark if targeting v5e specifically.
    for dh in range(K):
        for dw in range(K):
            t = dh * K + dw
            delta = (dh - pad) * W + (dw - pad)        # flat source offset
            if delta == 0:
                shifted = x
            else:
                # shifted[:, q] = x[:, q + delta] (circular; wrap is masked).
                shifted = pltpu.roll(x, shift=(-delta) % LANES, axis=1)
            m = m_ref[t:t + 1, :]                      # (1, LANES) 0/1 mask
            col_ref[t * cin_pad:(t + 1) * cin_pad, :] = shifted * m

    # --- single fused MXU dot -----------------------------------------------
    # (cout_pad, K*K*cin_pad) @ (K*K*cin_pad, B*HW) -> (cout_pad, B*HW), f32.
    acc = jnp.dot(w_ref[...], col_ref[...], preferred_element_type=jnp.float32)

    if has_bias:                           # only when norm != 'instance'
        acc = acc + b_ref[...].astype(jnp.float32)

    inv_n = np.float32(1.0 / HW)

    def _norm_act(a):
        # a covers exactly one image (cout_pad, HW) when norm == 'instance'.
        if norm == 'instance':
            # One-pass stats: var = E[x^2] - mean^2 (f32, biased -> matches
            # non-affine InstanceNorm2d, eps = 1e-5).
            s1 = jnp.sum(a, axis=1, keepdims=True)
            s2 = jnp.sum(a * a, axis=1, keepdims=True)
            mean = s1 * inv_n
            var = s2 * inv_n - mean * mean
            a = (a - mean) * jax.lax.rsqrt(var + eps)
        if activation == 'ReLU':
            a = jnp.maximum(a, 0.0)
        elif activation == 'LeakyReLU':
            a = jnp.where(a > 0, a, negative_slope * a)
        elif activation == 'Tanh':
            a = jnp.tanh(a)
        return a

    if norm == 'instance' and B > 1:
        # Per-image (per H*W segment) statistics; slices are 128-lane aligned.
        for bb in range(B):
            sl = slice(bb * HW, (bb + 1) * HW)
            o_ref[:, sl] = _norm_act(acc[:, sl]).astype(o_ref.dtype)
    else:
        o_ref[...] = _norm_act(acc).astype(o_ref.dtype)


def conv2d_block_forward(x, w, b=None, *, kernel_size=3, stride=1, padding=None,
                         norm='instance', activation='ReLU', pad_type='zero',
                         negative_slope=0.2, use_bf16_mxu=None, b_tile=None):
    """Pallas implementation of Conv2dBlock.forward (zero pad, stride 1, 'same')."""
    N, Cin, H, W = x.shape
    Cout = w.shape[0]
    K = int(kernel_size)
    if padding is None:
        padding = K // 2
    if stride != 1 or pad_type != 'zero' or padding != K // 2:
        raise NotImplementedError("only stride=1, pad_type='zero', padding=K//2")
    HW = H * W
    out_dtype = x.dtype

    if use_bf16_mxu is None:
        use_bf16_mxu = (x.dtype == jnp.bfloat16)
    comp_dtype = jnp.bfloat16 if use_bf16_mxu else x.dtype

    # Sublane padding rules: 8 for f32, 16 for bf16 operands.
    sub_in = 16 if comp_dtype == jnp.bfloat16 else 8
    sub_out = 16 if out_dtype == jnp.bfloat16 else 8
    cin_pad = -(-Cin // sub_in) * sub_in
    cout_pad = -(-Cout // sub_out) * sub_out
    KKC = K * K * cin_pad

    # --- fold images onto the lane axis --------------------------------------
    if b_tile is None:
        b_tile = 1
        for d in range(1, N + 1):
            if N % d:
                continue
            if d * HW > 2048:               # target lane width per grid step
                continue
            if N >= 2 and N // d < 2:       # keep >=2 parallel steps (v7x: 2 TCs)
                continue
            b_tile = d
    assert N % b_tile == 0
    G = N // b_tile
    LANES = b_tile * HW

    # --- lane-dense layouts (wrapper-side layout plumbing) -------------------
    x_f = x.astype(comp_dtype).reshape(G, b_tile, Cin, HW)
    x_f = jnp.transpose(x_f, (0, 2, 1, 3)).reshape(G, Cin, LANES)
    if cin_pad != Cin:
        x_f = jnp.pad(x_f, ((0, 0), (0, cin_pad - Cin), (0, 0)))

    # OIHW -> (cout_pad, K*K*cin_pad): one matrix for the single fused MXU dot.
    w_p = jnp.pad(w.astype(comp_dtype),
                  ((0, cout_pad - Cout), (0, cin_pad - Cin), (0, 0), (0, 0)))
    w2 = jnp.transpose(w_p, (0, 2, 3, 1)).reshape(cout_pad, KKC)

    # Host-precomputed 0/1 border masks (zero padding), tiled over folded images.
    pad_ = K // 2
    hh = np.arange(HW) // W
    ww = np.arange(HW) % W
    masks_np = np.zeros((K * K, HW), np.float32)
    for dh in range(K):
        for dw in range(K):
            sh = hh + dh - pad_
            sw = ww + dw - pad_
            masks_np[dh * K + dw] = ((sh >= 0) & (sh < H) &
                                     (sw >= 0) & (sw < W)).astype(np.float32)
    masks = jnp.asarray(np.tile(masks_np, (1, b_tile)), comp_dtype)  # (K*K, LANES)

    # Non-affine instance norm subtracts the per-channel mean -> the conv bias
    # cancels exactly, so it is dropped entirely in that configuration.
    has_bias = (b is not None) and (norm != 'instance')

    args = [x_f, w2, masks]
    in_specs = [
        pl.BlockSpec((None, cin_pad, LANES), lambda g: (g, 0, 0)),   # image group
        pl.BlockSpec((cout_pad, KKC), lambda g: (0, 0)),             # fused weights
        pl.BlockSpec((K * K, LANES), lambda g: (0, 0)),              # border masks
    ]
    if has_bias:
        b_col = jnp.pad(b.astype(jnp.float32), (0, cout_pad - Cout)).reshape(cout_pad, 1)
        args.append(b_col)
        in_specs.append(pl.BlockSpec((cout_pad, 1), lambda g: (0, 0)))

    kernel = functools.partial(
        _conv2d_block_kernel, K=K, W=W, B=b_tile, HW=HW, cin_pad=cin_pad,
        norm=norm, activation=activation, eps=1e-5,
        negative_slope=negative_slope, has_bias=has_bias)

    # VMEM budget estimate (double-buffered in/out + im2col scratch + weights
    # + f32 intermediates); explicit limit so the default scoped cap never binds
    # and we stay within v7x's 64 MiB physical VMEM.
    csz = jnp.dtype(comp_dtype).itemsize
    osz = jnp.dtype(out_dtype).itemsize
    est = (2 * cin_pad * LANES * csz + 2 * cout_pad * LANES * osz
           + KKC * LANES * csz + cout_pad * KKC * csz
           + 4 * cout_pad * LANES * 4 + (K * K) * LANES * csz)
    vmem_limit = int(min(max(2 * est, 32 << 20), 64 << 20))

    out_f = pl.pallas_call(
        kernel,
        out_shape=jax.ShapeDtypeStruct((G, cout_pad, LANES), out_dtype),
        grid_spec=pltpu.PrefetchScalarGridSpec(
            num_scalar_prefetch=0,
            grid=(G,),
            in_specs=in_specs,
            out_specs=pl.BlockSpec((None, cout_pad, LANES), lambda g: (g, 0, 0)),
            scratch_shapes=[pltpu.VMEM((KKC, LANES), comp_dtype)],   # im2col
        ),
        compiler_params=pltpu.CompilerParams(
            dimension_semantics=("parallel",),
            vmem_limit_bytes=vmem_limit),
    )(*args)

    out = out_f.reshape(G, cout_pad, b_tile, HW)
    out = jnp.transpose(out, (0, 2, 1, 3)).reshape(N, cout_pad, H, W)
    return out[:, :Cout]


def _reference_forward(x, w, b, *, kernel_size=3, norm='instance',
                       activation='ReLU', negative_slope=0.2):
    """Pure-JAX reference matching the PyTorch Conv2dBlock forward."""
    pad = kernel_size // 2
    out = jax.lax.conv_general_dilated(
        x, w, window_strides=(1, 1), padding=((pad, pad), (pad, pad)),
        dimension_numbers=('NCHW', 'OIHW', 'NCHW'))
    if b is not None:
        out = out + b[None, :, None, None]
    if norm == 'instance':
        m = jnp.mean(out, axis=(2, 3), keepdims=True)
        v = jnp.mean((out - m) ** 2, axis=(2, 3), keepdims=True)
        out = (out - m) * jax.lax.rsqrt(v + 1e-5)
    if activation == 'ReLU':
        out = jnp.maximum(out, 0.0)
    elif activation == 'LeakyReLU':
        out = jnp.where(out > 0, out, negative_slope * out)
    elif activation == 'Tanh':
        out = jnp.tanh(out)
    return out


def _check(got, want, rtol, atol, name):
    got = np.asarray(got)
    want = np.asarray(want)
    if not np.allclose(got, want, rtol=rtol, atol=atol):
        err = np.max(np.abs(got - want))
        raise AssertionError(f"{name}: Pallas kernel mismatch, max abs err = {err}")


if __name__ == "__main__":
    key = jax.random.PRNGKey(0)
    N, Cin, Cout, H, W = 2, 4, 8, 16, 16
    k = jax.random.split(key, 3)
    x = jax.random.normal(k[0], (N, Cin, H, W), jnp.float32)
    w = jax.random.normal(k[1], (Cout, Cin, 3, 3), jnp.float32) * 0.1
    b = jax.random.normal(k[2], (Cout,), jnp.float32) * 0.1

    # 1) Default DiOr config: instance norm + ReLU (f32 MXU path).
    out = jax.block_until_ready(
        conv2d_block_forward(x, w, b, kernel_size=3, stride=1, padding=1,
                             norm='instance', activation='ReLU'))
    ref = jax.block_until_ready(
        _reference_forward(x, w, b, norm='instance', activation='ReLU'))
    _check(out, ref, 1e-3, 1e-3, "instance/ReLU f32")

    # 2) norm='none' + LeakyReLU (exercises the bias path).
    out2 = jax.block_until_ready(
        conv2d_block_forward(x, w, b, norm='none', activation='LeakyReLU'))
    ref2 = jax.block_until_ready(
        _reference_forward(x, w, b, norm='none', activation='LeakyReLU'))
    _check(out2, ref2, 1e-3, 1e-3, "none/LeakyReLU f32")

    # 3) Batch folded onto the lane axis (B_TILE=2) with per-image instance norm.
    out3 = jax.block_until_ready(
        conv2d_block_forward(x, w, b, norm='instance', activation='ReLU',
                             b_tile=2))
    _check(out3, ref, 1e-3, 1e-3, "instance/ReLU f32 b_tile=2")

    # 4) bf16 MXU operands (f32 accumulation) — looser tolerance.
    out4 = jax.block_until_ready(
        conv2d_block_forward(x, w, b, norm='instance', activation='ReLU',
                             use_bf16_mxu=True))
    _check(out4, ref, 5e-2, 5e-2, "instance/ReLU bf16-MXU")

    print("KERNEL_OK")
</pallas_src>

<mosaic_0001>
module attributes {stable_mosaic.version = 11 : i64} {
  func.func @_conv2d_block_kernel(%arg0: i32, %arg1: memref<1x8x256xf32, #tpu.memory_space<vmem>>, %arg2: memref<8x72xf32, #tpu.memory_space<vmem>>, %arg3: memref<9x256xf32, #tpu.memory_space<vmem>>, %arg4: memref<1x8x256xf32, #tpu.memory_space<vmem>>, %arg5: memref<72x256xf32, #tpu.memory_space<vmem>>) attributes {dimension_semantics = [#tpu.dimension_semantics<parallel>], iteration_bounds = array<i64: 2>, scalar_prefetch = 0 : i64, scratch_operands = 1 : i64, tpu.core_type = #tpu.core_type<tc>, window_params = [{transform_indices = @transform_0, window_bounds = array<i64: 1, 8, 256>}, {pipeline_mode = #tpu.pipeline_mode<synchronous>, transform_indices = @transform_1, window_bounds = array<i64: 8, 72>}, {pipeline_mode = #tpu.pipeline_mode<synchronous>, transform_indices = @transform_2, window_bounds = array<i64: 9, 256>}, {transform_indices = @transform_3, window_bounds = array<i64: 1, 8, 256>}]} {
    %c0 = arith.constant 0 : index
    %c0_0 = arith.constant 0 : index
    %c0_1 = arith.constant 0 : index
    %0 = vector.load %arg1[%c0, %c0_0, %c0_1] : memref<1x8x256xf32, #tpu.memory_space<vmem>>, vector<1x8x256xf32>
    %1 = vector.shape_cast %0 : vector<1x8x256xf32> to vector<8x256xf32>
    %c17_i32 = arith.constant 17 : i32
    %2 = tpu.dynamic_rotate %1 by %c17_i32 dim 1 : vector<8x256xf32>, i32 -> vector<8x256xf32>
    %c0_2 = arith.constant 0 : index
    %c0_3 = arith.constant 0 : index
    %3 = vector.load %arg3[%c0_2, %c0_3] : memref<9x256xf32, #tpu.memory_space<vmem>>, vector<1x256xf32>
    %4 = vector.broadcast %3 : vector<1x256xf32> to vector<8x256xf32>
    %5 = arith.mulf %2, %4 : vector<8x256xf32>
    %c0_4 = arith.constant 0 : index
    %c0_5 = arith.constant 0 : index
    %6 = vector.load %arg5[%c0_4, %c0_5] : memref<72x256xf32, #tpu.memory_space<vmem>>, vector<8x256xf32>
    tpu.vector_store %arg5[%c0_4, %c0_5], %5 {strides = array<i32>} : memref<72x256xf32, #tpu.memory_space<vmem>>, vector<8x256xf32>,
    %c16_i32 = arith.constant 16 : i32
    %7 = tpu.dynamic_rotate %1 by %c16_i32 dim 1 : vector<8x256xf32>, i32 -> vector<8x256xf32>
    %c1 = arith.constant 1 : index
    %c0_6 = arith.constant 0 : index
    %8 = vector.load %arg3[%c1, %c0_6] : memref<9x256xf32, #tpu.memory_space<vmem>>, vector<1x256xf32>
    %9 = vector.broadcast %8 : vector<1x256xf32> to vector<8x256xf32>
    %10 = arith.mulf %7, %9 : vector<8x256xf32>
    %c8 = arith.constant 8 : index
    %c0_7 = arith.constant 0 : index
    %11 = vector.load %arg5[%c8, %c0_7] : memref<72x256xf32, #tpu.memory_space<vmem>>, vector<8x256xf32>
    tpu.vector_store %arg5[%c8, %c0_7], %10 {strides = array<i32>} : memref<72x256xf32, #tpu.memory_space<vmem>>, vector<8x256xf32>,
    %c15_i32 = arith.constant 15 : i32
    %12 = tpu.dynamic_rotate %1 by %c15_i32 dim 1 : vector<8x256xf32>, i32 -> vector<8x256xf32>
    %c2 = arith.constant 2 : index
    %c0_8 = arith.constant 0 : index
    %13 = vector.load %arg3[%c2, %c0_8] : memref<9x256xf32, #tpu.memory_space<vmem>>, vector<1x256xf32>
    %14 = vector.broadcast %13 : vector<1x256xf32> to vector<8x256xf32>
    %15 = arith.mulf %12, %14 : vector<8x256xf32>
    %c16 = arith.constant 16 : index
    %c0_9 = arith.constant 0 : index
    %16 = vector.load %arg5[%c16, %c0_9] : memref<72x256xf32, #tpu.memory_space<vmem>>, vector<8x256xf32>
    tpu.vector_store %arg5[%c16, %c0_9], %15 {strides = array<i32>} : memref<72x256xf32, #tpu.memory_space<vmem>>, vector<8x256xf32>,
    %c1_i32 = arith.constant 1 : i32
    %17 = tpu.dynamic_rotate %1 by %c1_i32 dim 1 : vector<8x256xf32>, i32 -> vector<8x256xf32>
    %c3 = arith.constant 3 : index
    %c0_10 = arith.constant 0 : index
    %18 = vector.load %arg3[%c3, %c0_10] : memref<9x256xf32, #tpu.memory_space<vmem>>, vector<1x256xf32>
    %19 = vector.broadcast %18 : vector<1x256xf32> to vector<8x256xf32>
    %20 = arith.mulf %17, %19 : vector<8x256xf32>
    %c24 = arith.constant 24 : index
    %c0_11 = arith.constant 0 : index
    %21 = vector.load %arg5[%c24, %c0_11] : memref<72x256xf32, #tpu.memory_space<vmem>>, vector<8x256xf32>
    tpu.vector_store %arg5[%c24, %c0_11], %20 {strides = array<i32>} : memref<72x256xf32, #tpu.memory_space<vmem>>, vector<8x256xf32>,
    %c4 = arith.constant 4 : index
    %c0_12 = arith.constant 0 : index
    %22 = vector.load %arg3[%c4, %c0_12] : memref<9x256xf32, #tpu.memory_space<vmem>>, vector<1x256xf32>
    %23 = vector.broadcast %22 : vector<1x256xf32> to vector<8x256xf32>
    %24 = arith.mulf %1, %23 : vector<8x256xf32>
    %c32 = arith.constant 32 : index
    %c0_13 = arith.constant 0 : index
    %25 = vector.load %arg5[%c32, %c0_13] : memref<72x256xf32, #tpu.memory_space<vmem>>, vector<8x256xf32>
    tpu.vector_store %arg5[%c32, %c0_13], %24 {strides = array<i32>} : memref<72x256xf32, #tpu.memory_space<vmem>>, vector<8x256xf32>,
    %c255_i32 = arith.constant 255 : i32
    %26 = tpu.dynamic_rotate %1 by %c255_i32 dim 1 : vector<8x256xf32>, i32 -> vector<8x256xf32>
    %c5 = arith.constant 5 : index
    %c0_14 = arith.constant 0 : index
    %27 = vector.load %arg3[%c5, %c0_14] : memref<9x256xf32, #tpu.memory_space<vmem>>, vector<1x256xf32>
    %28 = vector.broadcast %27 : vector<1x256xf32> to vector<8x256xf32>
    %29 = arith.mulf %26, %28 : vector<8x256xf32>
    %c40 = arith.constant 40 : index
    %c0_15 = arith.constant 0 : index
    %30 = vector.load %arg5[%c40, %c0_15] : memref<72x256xf32, #tpu.memory_space<vmem>>, vector<8x256xf32>
    tpu.vector_store %arg5[%c40, %c0_15], %29 {strides = array<i32>} : memref<72x256xf32, #tpu.memory_space<vmem>>, vector<8x256xf32>,
    %c241_i32 = arith.constant 241 : i32
    %31 = tpu.dynamic_rotate %1 by %c241_i32 dim 1 : vector<8x256xf32>, i32 -> vector<8x256xf32>
    %c6 = arith.constant 6 : index
    %c0_16 = arith.constant 0 : index
    %32 = vector.load %arg3[%c6, %c0_16] : memref<9x256xf32, #tpu.memory_space<vmem>>, vector<1x256xf32>
    %33 = vector.broadcast %32 : vector<1x256xf32> to vector<8x256xf32>
    %34 = arith.mulf %31, %33 : vector<8x256xf32>
    %c48 = arith.constant 48 : index
    %c0_17 = arith.constant 0 : index
    %35 = vector.load %arg5[%c48, %c0_17] : memref<72x256xf32, #tpu.memory_space<vmem>>, vector<8x256xf32>
    tpu.vector_store %arg5[%c48, %c0_17], %34 {strides = array<i32>} : memref<72x256xf32, #tpu.memory_space<vmem>>, vector<8x256xf32>,
    %c240_i32 = arith.constant 240 : i32
    %36 = tpu.dynamic_rotate %1 by %c240_i32 dim 1 : vector<8x256xf32>, i32 -> vector<8x256xf32>
    %c7 = arith.constant 7 : index
    %c0_18 = arith.constant 0 : index
    %37 = vector.load %arg3[%c7, %c0_18] : memref<9x256xf32, #tpu.memory_space<vmem>>, vector<1x256xf32>
    %38 = vector.broadcast %37 : vector<1x256xf32> to vector<8x256xf32>
    %39 = arith.mulf %36, %38 : vector<8x256xf32>
    %c56 = arith.constant 56 : index
    %c0_19 = arith.constant 0 : index
    %40 = vector.load %arg5[%c56, %c0_19] : memref<72x256xf32, #tpu.memory_space<vmem>>, vector<8x256xf32>
    tpu.vector_store %arg5[%c56, %c0_19], %39 {strides = array<i32>} : memref<72x256xf32, #tpu.memory_space<vmem>>, vector<8x256xf32>,
    %c239_i32 = arith.constant 239 : i32
    %41 = tpu.dynamic_rotate %1 by %c239_i32 dim 1 : vector<8x256xf32>, i32 -> vector<8x256xf32>
    %c8_20 = arith.constant 8 : index
    %c0_21 = arith.constant 0 : index
    %42 = vector.load %arg3[%c8_20, %c0_21] : memref<9x256xf32, #tpu.memory_space<vmem>>, vector<1x256xf32>
    %43 = vector.broadcast %42 : vector<1x256xf32> to vector<8x256xf32>
    %44 = arith.mulf %41, %43 : vector<8x256xf32>
    %c64 = arith.constant 64 : index
    %c0_22 = arith.constant 0 : index
    %45 = vector.load %arg5[%c64, %c0_22] : memref<72x256xf32, #tpu.memory_space<vmem>>, vector<8x256xf32>
    tpu.vector_store %arg5[%c64, %c0_22], %44 {strides = array<i32>} : memref<72x256xf32, #tpu.memory_space<vmem>>, vector<8x256xf32>,
    %c0_23 = arith.constant 0 : index
    %c0_24 = arith.constant 0 : index
    %46 = vector.load %arg2[%c0_23, %c0_24] : memref<8x72xf32, #tpu.memory_space<vmem>>, vector<8x72xf32>
    %c0_25 = arith.constant 0 : index
    %c0_26 = arith.constant 0 : index
    %47 = vector.load %arg5[%c0_25, %c0_26] : memref<72x256xf32, #tpu.memory_space<vmem>>, vector<72x256xf32>
    %cst = arith.constant dense<0.000000e+00> : vector<8x256xf32>
    %48 = tpu.matmul %46, %47, %cst {dimension_numbers = #tpu.dot_dimension_numbers<[1], [0], [0], [1], [0, 0, 1, 1], [], []>} : vector<8x72xf32>, vector<72x256xf32>, vector<8x256xf32> -> vector<8x256xf32>
    %cst_27 = arith.constant dense<0.000000e+00> : vector<8xf32>
    %49 = vector.multi_reduction <add>, %48, %cst_27 [1] : vector<8x256xf32> to vector<8xf32>
    %50 = vector.shape_cast %49 : vector<8xf32> to vector<8x1xf32>
    %51 = arith.mulf %48, %48 : vector<8x256xf32>
    %cst_28 = arith.constant dense<0.000000e+00> : vector<8xf32>
    %52 = vector.multi_reduction <add>, %51, %cst_28 [1] : vector<8x256xf32> to vector<8xf32>
    %53 = vector.shape_cast %52 : vector<8xf32> to vector<8x1xf32>
    %cst_29 = arith.constant 3.906250e-03 : f32
    %54 = vector.broadcast %cst_29 : f32 to vector<8x1xf32>
    %55 = arith.mulf %50, %54 : vector<8x1xf32>
    %cst_30 = arith.constant 3.906250e-03 : f32
    %56 = vector.broadcast %cst_30 : f32 to vector<8x1xf32>
    %57 = arith.mulf %53, %56 : vector<8x1xf32>
    %58 = arith.mulf %55, %55 : vector<8x1xf32>
    %59 = arith.subf %57, %58 : vector<8x1xf32>
    %60 = vector.broadcast %55 : vector<8x1xf32> to vector<8x256xf32>
    %61 = arith.subf %48, %60 : vector<8x256xf32>
    %cst_31 = arith.constant 9.99999974E-6 : f32
    %62 = vector.broadcast %cst_31 : f32 to vector<8x1xf32>
    %63 = arith.addf %59, %62 : vector<8x1xf32>
    %64 = math.rsqrt %63 : vector<8x1xf32>
    %65 = vector.broadcast %64 : vector<8x1xf32> to vector<8x256xf32>
    %66 = arith.mulf %61, %65 : vector<8x256xf32>
    %cst_32 = arith.constant 0.000000e+00 : f32
    %67 = vector.broadcast %cst_32 : f32 to vector<8x256xf32>
    %68 = arith.maximumf %66, %67 : vector<8x256xf32>
    %c0_33 = arith.constant 0 : index
    %c0_34 = arith.constant 0 : index
    %c0_35 = arith.constant 0 : index
    %69 = vector.load %arg4[%c0_33, %c0_34, %c0_35] : memref<1x8x256xf32, #tpu.memory_space<vmem>>, vector<1x8x256xf32>
    %70 = vector.shape_cast %69 : vector<1x8x256xf32> to vector<8x256xf32>
    %71 = vector.shape_cast %68 : vector<8x256xf32> to vector<1x8x256xf32>
    tpu.vector_store %arg4[%c0_33, %c0_34, %c0_35], %71 {strides = array<i32>} : memref<1x8x256xf32, #tpu.memory_space<vmem>>, vector<1x8x256xf32>,
    return
  }
  func.func @transform_0(%arg0: i32) -> (i32, i32, i32) {
    %c0_i32 = arith.constant 0 : i32
    %c0_i32_0 = arith.constant 0 : i32
    %c0_i32_1 = arith.constant 0 : i32
    return %arg0, %c0_i32, %c0_i32_0 : i32, i32, i32
  }
  func.func @transform_1(%arg0: i32) -> (i32, i32) {
    %c0_i32 = arith.constant 0 : i32
    %c0_i32_0 = arith.constant 0 : i32
    %c0_i32_1 = arith.constant 0 : i32
    return %c0_i32, %c0_i32_0 : i32, i32
  }
  func.func @transform_2(%arg0: i32) -> (i32, i32) {
    %c0_i32 = arith.constant 0 : i32
    %c0_i32_0 = arith.constant 0 : i32
    %c0_i32_1 = arith.constant 0 : i32
    return %c0_i32, %c0_i32_0 : i32, i32
  }
  func.func @transform_3(%arg0: i32) -> (i32, i32, i32) {
    %c0_i32 = arith.constant 0 : i32
    %c0_i32_0 = arith.constant 0 : i32
    %c0_i32_1 = arith.constant 0 : i32
    return %arg0, %c0_i32, %c0_i32_0 : i32, i32, i32
  }
}

</mosaic_0001>

<llo_original>
// kernel: tpu_custom_call.1
$region0: #{tpu_custom_call.1}
  #allocation0 [shape = 'u32[]', space=smem, size = 0x4, offset = 0x4, fixed_abs, tag = 'smem constant byte address 0x4 - core index']
  #allocation1 [shape = 'u32[72,128]{1,0:T(1,128)}', space=vmem, size = 0x9000, scoped, tag = 'internal scratch']
  #allocation2 [shape = 'f32[72,256]{1,0:T(8,128)}', space=vmem, size = 0x12000, scoped, tag = 'scratch operand']
  %s0 = inlined_call_operand.hbm [shape: f32[2,8,256], index: 0, kind: input, shape index: {}]
  %s1 = inlined_call_operand.hbm [shape: f32[8,72], index: 1, kind: input, shape index: {}]
  %s2 = inlined_call_operand.hbm [shape: f32[9,256], index: 2, kind: input, shape index: {}]
  %s3 = inlined_call_operand.hbm [shape: f32[2,8,256], index: 3, kind: output, shape index: {}]
  %s4 = sld [smem:[#allocation0]]
  $region57: #{tpu_custom_call.1} parent=0
    _
  %s6 = ssub.s32 1, %s4
  %s7 = scalar_select 0, %s6, %s4
  $region1: #{tpu_custom_call.1} parent=0
    #allocation3 [shape = 'u8[16384]{0}', space=vmem, size = 0x4000, scoped, tag = 'input window, operand 0']
    #allocation4 [shape = 's32[2]{0}', space=sflag, size = 0x8, scoped, tag = 'scoped memory for tpu_custom_call.1']
    #allocation5 [shape = 's32[2]{0}', space=sflag, size = 0x8, scoped, tag = 'scoped memory for tpu_custom_call.1']
    #allocation6 [shape = 'u8[4096]{0}', space=vmem, size = 0x1000, scoped, tag = 'input window, operand 1, single buffered']
    #allocation7 [shape = 's32[1]{0}', space=sflag, size = 0x4, scoped, tag = 'scoped memory for tpu_custom_call.1']
    #allocation8 [shape = 'u8[16384]{0}', space=vmem, size = 0x4000, scoped, tag = 'input window, operand 2, single buffered']
    #allocation9 [shape = 'u8[16384]{0}', space=vmem, size = 0x4000, scoped, tag = 'output window, operand 0']
    %8 = vsyncpa [#allocation4], 0
    %s9 = scalar_lea.sflag [#allocation4], 1
    %10 = vsyncpa %s9, 0
    %11 = vsyncpa [#allocation7], 0
    %12 = vsyncpa [#allocation5], 0
    %s13 = scalar_lea.sflag [#allocation5], 1
    %14 = vsyncpa %s13, 0
    loop: start=0, step=1, limit=4
    $region2: #{tpu_custom_call.1} parent=1 // loop_pre_header
      _
    $region3: #{tpu_custom_call.1} parent=1 // loop_header
      %s16 = sphi 0, %s20
      %p17 = scmp.ge.s32.totalorder %s16, 4
      %s26 = sphi 0, %s28
      %s29 = sphi 0, %s26
      %s30 = sphi 0, %s29
      %s46 = sphi 0, %s30
      %s50 = sphi 0, %s50
      %s52 = sphi 0, %s50
      %s53 = sphi 0, %s52
      %s67 = sphi 0, %s53
      %s71 = sphi 0, %s71
      %s73 = sphi 0, %s71
      %s74 = sphi 0, %s73
      %s88 = sphi 0, %s74
      %s94 = sphi 0, %s96
      %s97 = sphi 0, %s94
      %s98 = sphi 0, %s97
      %s114 = sphi 0, %s98
    $region4: #{tpu_custom_call.1} parent=1 // loop_header_branch
      %19 = sbr.rel (%p17) target = $region8
    $region5: #{tpu_custom_call.1} parent=1 // loop_body
      %s21 = ssub.s32 %s16, 1
      %s22 = ssub.s32 %s16, 2
      %s23 = sadd.s32 %s16, 1
      %s24 = ssub.s32 %s16, %s23
      %p25 = scmp.eq.s32.totalorder %s24, 0
      %s27 = sadd.s32 %s26, 1
      %s28 = scalar_select %p25, %s26, %s27
      %p31 = pneg %p25
      %p32 = scmp.eq.s32.totalorder %s16, 1
      %p33 = por %p31, %p32
      %p34 = scmp.ne.s32.totalorder %s26, %s29
      %p35 = scmp.eq.s32.totalorder %s16, 0
      %p36 = por %p34, %p35
      %p37 = scmp.ne.s32.totalorder %s26, %s29
      %p38 = scmp.eq.s32.totalorder %s21, 1
      %p39 = por %p37, %p38
      %p40 = scmp.ne.s32.totalorder %s29, %s30
      %p41 = scmp.eq.s32.totalorder %s21, 0
      %p42 = por %p40, %p41
      %p43 = scmp.ne.s32.totalorder %s29, %s30
      %p44 = scmp.eq.s32.totalorder %s22, 1
      %p45 = por %p43, %p44
      %p47 = scmp.ne.s32.totalorder %s30, %s46
      %p48 = scmp.eq.s32.totalorder %s22, 0
      %p49 = por %p47, %p48
      %s51 = sadd.s32 %s50, 1
      %p54 = scmp.eq.s32.totalorder %s16, 1
      %p55 = scmp.ne.s32.totalorder %s50, %s52
      %p56 = scmp.eq.s32.totalorder %s16, 0
      %p57 = por %p55, %p56
      %p58 = scmp.ne.s32.totalorder %s50, %s52
      %p59 = scmp.eq.s32.totalorder %s21, 1
      %p60 = por %p58, %p59
      %p61 = scmp.ne.s32.totalorder %s52, %s53
      %p62 = scmp.eq.s32.totalorder %s21, 0
      %p63 = por %p61, %p62
      %p64 = scmp.ne.s32.totalorder %s52, %s53
      %p65 = scmp.eq.s32.totalorder %s22, 1
      %p66 = por %p64, %p65
      %p68 = scmp.ne.s32.totalorder %s53, %s67
      %p69 = scmp.eq.s32.totalorder %s22, 0
      %p70 = por %p68, %p69
      %s72 = sadd.s32 %s71, 1
      %p75 = scmp.eq.s32.totalorder %s16, 1
      %p76 = scmp.ne.s32.totalorder %s71, %s73
      %p77 = scmp.eq.s32.totalorder %s16, 0
      %p78 = por %p76, %p77
      %p79 = scmp.ne.s32.totalorder %s71, %s73
      %p80 = scmp.eq.s32.totalorder %s21, 1
      %p81 = por %p79, %p80
      %p82 = scmp.ne.s32.totalorder %s73, %s74
      %p83 = scmp.eq.s32.totalorder %s21, 0
      %p84 = por %p82, %p83
      %p85 = scmp.ne.s32.totalorder %s73, %s74
      %p86 = scmp.eq.s32.totalorder %s22, 1
      %p87 = por %p85, %p86
      %p89 = scmp.ne.s32.totalorder %s74, %s88
      %p90 = scmp.eq.s32.totalorder %s22, 0
      %p91 = por %p89, %p90
      %s92 = ssub.s32 %s16, %s23
      %p93 = scmp.eq.s32.totalorder %s92, 0
      %s95 = sadd.s32 %s94, 1
      %s96 = scalar_select %p93, %s94, %s95
      %p99 = pneg %p93
      %p100 = scmp.eq.s32.totalorder %s16, 1
      %p101 = por %p99, %p100
      %p102 = scmp.ne.s32.totalorder %s94, %s97
      %p103 = scmp.eq.s32.totalorder %s16, 0
      %p104 = por %p102, %p103
      %p105 = scmp.ne.s32.totalorder %s94, %s97
      %p106 = scmp.eq.s32.totalorder %s21, 1
      %p107 = por %p105, %p106
      %p108 = scmp.ne.s32.totalorder %s97, %s98
      %p109 = scmp.eq.s32.totalorder %s21, 0
      %p110 = por %p108, %p109
      %p111 = scmp.ne.s32.totalorder %s97, %s98
      %p112 = scmp.eq.s32.totalorder %s22, 1
      %p113 = por %p111, %p112
      %p115 = scmp.ne.s32.totalorder %s98, %s114
      %p116 = scmp.eq.s32.totalorder %s22, 0
      %p117 = por %p115, %p116
      %p118 = scmp.le.s32.totalorder 1, %s16
      %p119 = scmp.lt.s32.totalorder %s16, 3
      %p120 = pnand %p118, %p119
      %p121 = pneg %p120
      // Predicated region
      $region9: #{tpu_custom_call.1} parent=5 // pred_check
        _
      $region10: #{tpu_custom_call.1} parent=5 // pred_check_branch
        %123 = sbr.rel (%p120) target = $region12
      $region11: #{tpu_custom_call.1} parent=5 // pred_region
        %s124 = ssub.s32 %s16, 1
        // Predicated region
        $region13: #{tpu_custom_call.1} parent=11 // pred_check
          %p125 = pneg %p63
        $region14: #{tpu_custom_call.1} parent=11 // pred_check_branch
          %127 = sbr.rel (%p125) target = $region16
        $region15: #{tpu_custom_call.1} parent=11 // pred_region
          %129 = vsyncadd [#allocation7], 0
          %s131 = sshll.u32 %s1, 4
          %s132 = int_to_ptr.hbm [resolvable:$true] %s131
          %s133 = sshll.u32 [#allocation6], 4
          %s134 = int_to_ptr.vmem [resolvable:$true] %s133
          %136 = dma.hbm_to_vmem [thread:$0]  %s132, 128, %s134, [#allocation7]
        $region16: #{tpu_custom_call.1} parent=11 // pred_fallthru
          _
        // Predicated region
        $region17: #{tpu_custom_call.1} parent=11 // pred_check
          %p137 = pneg %p84
        $region18: #{tpu_custom_call.1} parent=11 // pred_check_branch
          %139 = sbr.rel (%p137) target = $region20
        $region19: #{tpu_custom_call.1} parent=11 // pred_region
          %141 = vsyncadd [#allocation7], 0
          %s142 = sshll.u32 %s2, 4
          %s143 = int_to_ptr.hbm [resolvable:$true] %s142
          %s144 = sshll.u32 [#allocation8], 4
          %s145 = int_to_ptr.vmem [resolvable:$true] %s144
          %150 = dma.hbm_to_vmem [thread:$0]  %s143, 512, %s145, [#allocation7], 256, 256, 16
        $region20: #{tpu_custom_call.1} parent=11 // pred_fallthru
          _
      $region12: #{tpu_custom_call.1} parent=5 // pred_fallthru
        _
      %p151 = scmp.lt.s32.totalorder %s16, 2
      // Predicated region
      $region21: #{tpu_custom_call.1} parent=5 // pred_check
        %p152 = pneg %p151
      $region22: #{tpu_custom_call.1} parent=5 // pred_check_branch
        %154 = sbr.rel (%p152) target = $region24
      $region23: #{tpu_custom_call.1} parent=5 // pred_region
        // Predicated region
        $region25: #{tpu_custom_call.1} parent=23 // pred_check
          %p155 = pneg %p36
        $region26: #{tpu_custom_call.1} parent=23 // pred_check_branch
          %157 = sbr.rel (%p155) target = $region28
        $region27: #{tpu_custom_call.1} parent=23 // pred_region
          %s158 = sand.u32 %s26, 1
          %s159 = scalar_lea.sflag [#allocation4], %s158
          %s160 = sand.u32 %s26, 1
          %s161 = smul.addr %s160, 16
          %s162 = scalar_lea.vmem [#allocation3], %s161
          %164 = vsyncadd %s159, 0
          %s165 = smul.addr %s16, 2
          %s166 = smul.addr %s165, 8
          %s167 = scalar_lea.hbm %s0, %s166
          %s169 = sshll.u32 %s167, 4
          %s170 = int_to_ptr.hbm [resolvable:$true] %s169
          %s171 = sshll.u32 %s162, 4
          %s172 = int_to_ptr.vmem [resolvable:$true] %s171
          %174 = dma.hbm_to_vmem [thread:$0]  %s170, 256, %s172, %s159
        $region28: #{tpu_custom_call.1} parent=23 // pred_fallthru
          _
      $region24: #{tpu_custom_call.1} parent=5 // pred_fallthru
        _
      %p175 = scmp.le.s32.totalorder 1, %s16
      %p176 = scmp.lt.s32.totalorder %s16, 3
      %p177 = pnand %p175, %p176
      %p178 = pneg %p177
      // Predicated region
      $region29: #{tpu_custom_call.1} parent=5 // pred_check
        _
      $region30: #{tpu_custom_call.1} parent=5 // pred_check_branch
        %180 = sbr.rel (%p177) target = $region32
      $region31: #{tpu_custom_call.1} parent=5 // pred_region
        %s181 = ssub.s32 %s16, 1
        %s182 = sand.u32 %s29, 1
        %s183 = scalar_lea.sflag [#allocation4], %s182
        %s184 = sand.u32 %s29, 1
        %s185 = smul.addr %s184, 16
        %s186 = scalar_lea.vmem [#allocation3], %s185
        // Predicated region
        $region33: #{tpu_custom_call.1} parent=31 // pred_check
          %p187 = pneg %p42
        $region34: #{tpu_custom_call.1} parent=31 // pred_check_branch
          %189 = sbr.rel (%p187) target = $region36
        $region35: #{tpu_custom_call.1} parent=31 // pred_region
          %191 = dma.done %s183, 256
        $region36: #{tpu_custom_call.1} parent=31 // pred_fallthru
          _
        // Predicated region
        $region37: #{tpu_custom_call.1} parent=31 // pred_check
          %p192 = pneg %p63
        $region38: #{tpu_custom_call.1} parent=31 // pred_check_branch
          %194 = sbr.rel (%p192) target = $region40
        $region39: #{tpu_custom_call.1} parent=31 // pred_region
          %196 = dma.done [#allocation7], 128
        $region40: #{tpu_custom_call.1} parent=31 // pred_fallthru
          _
        // Predicated region
        $region41: #{tpu_custom_call.1} parent=31 // pred_check
          %p197 = pneg %p84
        $region42: #{tpu_custom_call.1} parent=31 // pred_check_branch
          %199 = sbr.rel (%p197) target = $region44
        $region43: #{tpu_custom_call.1} parent=31 // pred_region
          %201 = dma.done [#allocation7], 512
        $region44: #{tpu_custom_call.1} parent=31 // pred_fallthru
          _
        %s202 = sand.u32 %s29, 1
        %s203 = scalar_lea.sflag [#allocation4], %s202
        %s204 = sand.u32 %s29, 1
        %s205 = smul.addr %s204, 16
        %s206 = scalar_lea.vmem [#allocation3], %s205
        %p207 = pneg %p42
        %p208 = pneg %p39
        %p209 = pneg %p63
        %p210 = pneg %p60
        %p211 = pneg %p84
        %p212 = pneg %p81
        %p213 = pneg %p110
        %p214 = pneg %p107
        %s215 = sand.u32 %s97, 1
        %s216 = scalar_lea.sflag [#allocation5], %s215
        %s217 = sand.u32 %s97, 1
        %s218 = smul.addr %s217, 16
        %s219 = scalar_lea.vmem [#allocation9], %s218
        %v220 = vld [vmem:[%s186] sm:$0xff]
        %v221 = vld [vmem:[%s186 + $0x8] sm:$0xff]
        %222 = vrot.lane.b32.xlu0 %v220, 17
        %v223 = vpop.permute.xlu0 %222
        %224 = vrot.lane.b32.xlu0 %v221, 17
        %v225 = vpop.permute.xlu0 %224
        %v226 = vlaneseq
        %v227 = vand.u32 %v226, 127
        %vm228 = vcmp.lt.s32.totalorder %v227, 17
        %v229 = vsel %vm228, %v223, %v225
        %v230 = vsel %vm228, %v225, %v223
        %v231 = vld [vmem:[#allocation8] ss:$8 sm:$0x3]
        %v233 = vperm.slane %v231, 0
        %v234 = vperm.slane %v231, 1
        %v237 = vmul.f32 %v230, %v233
        %v238 = vmul.f32 %v229, %v234
        %239 = vst [vmem:[#allocation2] sm:$0xff] %v237
        %240 = vst [vmem:[#allocation2 + $0x8] sm:$0xff] %v238
        %241 = vrot.lane.b32.xlu0 %v220, 16
        %v242 = vpop.permute.xlu0 %241
        %243 = vrot.lane.b32.xlu0 %v221, 16
        %v244 = vpop.permute.xlu0 %243
        %vm245 = vcmp.lt.s32.totalorder %v227, 16
        %v246 = vsel %vm245, %v242, %v244
        %v247 = vsel %vm245, %v244, %v242
        %s248 = scalar_lea.vmem [#allocation8], 1
        %v249 = vld [vmem:[%s248] ss:$8 sm:$0x3]
        %v251 = vperm.slane %v249, 0
        %v252 = vperm.slane %v249, 1
        %v255 = vmul.f32 %v247, %v251
        %v256 = vmul.f32 %v246, %v252
        %257 = vst [vmem:[#allocation2 + $0x10] sm:$0xff] %v255
        %258 = vst [vmem:[#allocation2 + $0x18] sm:$0xff] %v256
        %259 = vrot.lane.b32.xlu0 %v220, 15
        %v260 = vpop.permute.xlu0 %259
        %261 = vrot.lane.b32.xlu0 %v221, 15
        %v262 = vpop.permute.xlu0 %261
        %vm263 = vcmp.lt.s32.totalorder %v227, 15
        %v264 = vsel %vm263, %v260, %v262
        %v265 = vsel %vm263, %v262, %v260
        %s266 = scalar_lea.vmem [#allocation8], 2
        %v267 = vld [vmem:[%s266] ss:$8 sm:$0x3]
        %v269 = vperm.slane %v267, 0
        %v270 = vperm.slane %v267, 1
        %v273 = vmul.f32 %v265, %v269
        %v274 = vmul.f32 %v264, %v270
        %275 = vst [vmem:[#allocation2 + $0x20] sm:$0xff] %v273
        %276 = vst [vmem:[#allocation2 + $0x28] sm:$0xff] %v274
        %277 = vrot.lane.b32.xlu0 %v220, 1
        %v278 = vpop.permute.xlu0 %277
        %279 = vrot.lane.b32.xlu0 %v221, 1
        %v280 = vpop.permute.xlu0 %279
        %vm281 = vcmp.lt.s32.totalorder %v227, 1
        %v282 = vsel %vm281, %v278, %v280
        %v283 = vsel %vm281, %v280, %v278
        %s284 = scalar_lea.vmem [#allocation8], 3
        %v285 = vld [vmem:[%s284] ss:$8 sm:$0x3]
        %v287 = vperm.slane %v285, 0
        %v288 = vperm.slane %v285, 1
        %v291 = vmul.f32 %v283, %v287
        %v292 = vmul.f32 %v282, %v288
        %293 = vst [vmem:[#allocation2 + $0x30] sm:$0xff] %v291
        %294 = vst [vmem:[#allocation2 + $0x38] sm:$0xff] %v292
        %s295 = scalar_lea.vmem [#allocation8], 4
        %v296 = vld [vmem:[%s295] ss:$8 sm:$0x3]
        %v298 = vperm.slane %v296, 0
        %v299 = vperm.slane %v296, 1
        %v302 = vmul.f32 %v220, %v298
        %v303 = vmul.f32 %v221, %v299
        %304 = vst [vmem:[#allocation2 + $0x40] sm:$0xff] %v302
        %305 = vst [vmem:[#allocation2 + $0x48] sm:$0xff] %v303
        %306 = vrot.lane.b32.xlu0 %v220, 127
        %v307 = vpop.permute.xlu0 %306
        %308 = vrot.lane.b32.xlu0 %v221, 127
        %v309 = vpop.permute.xlu0 %308
        %vm310 = vcmp.lt.s32.totalorder %v227, 127
        %v311 = vsel %vm310, %v307, %v309
        %v312 = vsel %vm310, %v309, %v307
        %s313 = scalar_lea.vmem [#allocation8], 5
        %v314 = vld [vmem:[%s313] ss:$8 sm:$0x3]
        %v316 = vperm.slane %v314, 0
        %v317 = vperm.slane %v314, 1
        %v320 = vmul.f32 %v311, %v316
        %v321 = vmul.f32 %v312, %v317
        %322 = vst [vmem:[#allocation2 + $0x50] sm:$0xff] %v320
        %323 = vst [vmem:[#allocation2 + $0x58] sm:$0xff] %v321
        %324 = vrot.lane.b32.xlu0 %v220, 113
        %v325 = vpop.permute.xlu0 %324
        %326 = vrot.lane.b32.xlu0 %v221, 113
        %v327 = vpop.permute.xlu0 %326
        %vm328 = vcmp.lt.s32.totalorder %v227, 113
        %v329 = vsel %vm328, %v325, %v327
        %v330 = vsel %vm328, %v327, %v325
        %s331 = scalar_lea.vmem [#allocation8], 6
        %v332 = vld [vmem:[%s331] ss:$8 sm:$0x3]
        %v334 = vperm.slane %v332, 0
        %v335 = vperm.slane %v332, 1
        %v338 = vmul.f32 %v329, %v334
        %v339 = vmul.f32 %v330, %v335
        %340 = vst [vmem:[#allocation2 + $0x60] sm:$0xff] %v338
        %341 = vst [vmem:[#allocation2 + $0x68] sm:$0xff] %v339
        %342 = vrot.lane.b32.xlu0 %v220, 112
        %v343 = vpop.permute.xlu0 %342
        %344 = vrot.lane.b32.xlu0 %v221, 112
        %v345 = vpop.permute.xlu0 %344
        %vm346 = vcmp.lt.s32.totalorder %v227, 112
        %v347 = vsel %vm346, %v343, %v345
        %v348 = vsel %vm346, %v345, %v343
        %s349 = scalar_lea.vmem [#allocation8], 7
        %v350 = vld [vmem:[%s349] ss:$8 sm:$0x3]
        %v352 = vperm.slane %v350, 0
        %v353 = vperm.slane %v350, 1
        %v356 = vmul.f32 %v347, %v352
        %v357 = vmul.f32 %v348, %v353
        %358 = vst [vmem:[#allocation2 + $0x70] sm:$0xff] %v356
        %359 = vst [vmem:[#allocation2 + $0x78] sm:$0xff] %v357
        %360 = vrot.lane.b32.xlu0 %v220, 111
        %v361 = vpop.permute.xlu0 %360
        %362 = vrot.lane.b32.xlu0 %v221, 111
        %v363 = vpop.permute.xlu0 %362
        %vm364 = vcmp.lt.s32.totalorder %v227, 111
        %v365 = vsel %vm364, %v361, %v363
        %v366 = vsel %vm364, %v363, %v361
        %s367 = scalar_lea.vmem [#allocation8], 16
        %v368 = vld [vmem:[%s367] ss:$8 sm:$0x3]
        %v370 = vperm.slane %v368, 0
        %v371 = vperm.slane %v368, 1
        %v374 = vmul.f32 %v365, %v370
        %v375 = vmul.f32 %v366, %v371
        %376 = vst [vmem:[#allocation2 + $0x80] sm:$0xff] %v374
        %377 = vst [vmem:[#allocation2 + $0x88] sm:$0xff] %v375
        %v378 = vld [vmem:[#allocation6] sm:$0xff]
        %v379 = vld [vmem:[#allocation2] sm:$0xff]
        %v380 = vld [vmem:[#allocation2 + $0x8] sm:$0xff]
        %v381 = vld [vmem:[#allocation2 + $0x10] sm:$0xff]
        %v382 = vld [vmem:[#allocation2 + $0x18] sm:$0xff]
        %v383 = vld [vmem:[#allocation2 + $0x20] sm:$0xff]
        %v384 = vld [vmem:[#allocation2 + $0x28] sm:$0xff]
        %v385 = vld [vmem:[#allocation2 + $0x30] sm:$0xff]
        %v386 = vld [vmem:[#allocation2 + $0x38] sm:$0xff]
        %v387 = vld [vmem:[#allocation2 + $0x40] sm:$0xff]
        %v388 = vld [vmem:[#allocation2 + $0x48] sm:$0xff]
        %v389 = vld [vmem:[#allocation2 + $0x50] sm:$0xff]
        %v390 = vld [vmem:[#allocation2 + $0x58] sm:$0xff]
        %v391 = vld [vmem:[#allocation2 + $0x60] sm:$0xff]
        %v392 = vld [vmem:[#allocation2 + $0x68] sm:$0xff]
        %v393 = vld [vmem:[#allocation2 + $0x70] sm:$0xff]
        %v394 = vld [vmem:[#allocation2 + $0x78] sm:$0xff]
        %v395 = vld [vmem:[#allocation2 + $0x80] sm:$0xff]
        %v396 = vld [vmem:[#allocation2 + $0x88] sm:$0xff]
        %vm397 = vcmask 588800
        %v399 = vsel %vm397, %v378, 0
        %401 = vmatpush.msra.mxu0 0.0
        %402 = vmatpush.msra.mxu0 0.0
        %403 = vmatpush.msra.mxu0 0.0
        %404 = vmatpush.msra.mxu0 0.0
        %405 = vmatpush.msra.mxu0 0.0
        %406 = vmatpush.msra.mxu0 0.0
        %407 = vmatpush.msra.mxu0 0.0
        %408 = vmatpush.msra.mxu0 %v395
        %409 = vmatpush.msra.mxu0 %v393
        %410 = vmatpush.msra.mxu0 %v391
        %411 = vmatpush.msra.mxu0 %v389
        %412 = vmatpush.msra.mxu0 %v387
        %413 = vmatpush.msra.mxu0 %v385
        %414 = vmatpush.msra.mxu0 %v383
        %415 = vmatpush.msra.mxu0 %v381
        %416 = vmatpush.msra.mxu0 %v379
        %417 = vmatmul.f32.gmra.mxu0 %v399
        %v418 = vpop.f32.mrf.mxu0
        %v419 = vadd.f32 0.0, %v418
        %420 = vdwg.mxu0
        %421 = vmatpush.msra.mxu0 0.0
        %422 = vmatpush.msra.mxu0 0.0
        %423 = vmatpush.msra.mxu0 0.0
        %424 = vmatpush.msra.mxu0 0.0
        %425 = vmatpush.msra.mxu0 0.0
        %426 = vmatpush.msra.mxu0 0.0
        %427 = vmatpush.msra.mxu0 0.0
        %428 = vmatpush.msra.mxu0 %v396
        %429 = vmatpush.msra.mxu0 %v394
        %430 = vmatpush.msra.mxu0 %v392
        %431 = vmatpush.msra.mxu0 %v390
        %432 = vmatpush.msra.mxu0 %v388
        %433 = vmatpush.msra.mxu0 %v386
        %434 = vmatpush.msra.mxu0 %v384
        %435 = vmatpush.msra.mxu0 %v382
        %436 = vmatpush.msra.mxu0 %v380
        %437 = vmatmul.f32.gmra.mxu0 %v399
        %v438 = vpop.f32.mrf.mxu0
        %v439 = vadd.f32 0.0, %v438
        %440 = vdwg.mxu0
        %v441 = vadd.f32 %v419, %v439
        %442 = vadd.xlane.f32.xlu0 %v441
        %v443 = vpop.xlane.xlu0 %442
        %v444 = vmul.f32 %v419, %v419
        %v445 = vmul.f32 %v439, %v439
        %v446 = vadd.f32 %v444, %v445
        %447 = vadd.xlane.f32.xlu0 %v446
        %v448 = vpop.xlane.xlu0 %447
        %v449 = vmul.f32 %v443, 0.00390625
        %v450 = vmul.f32 %v448, 0.00390625
        %v451 = vmul.f32 %v449, %v449
        %v452 = vsub.f32 %v450, %v451
        %v453 = vsub.f32 %v419, %v449
        %v454 = vsub.f32 %v439, %v449
        %v455 = vadd.f32 %v452, 1e-05
        %v456 = vrsqrt.pop %v455
        %v457 = vmul.f32 %v456, %v455
        %v458 = vmul.f32 %v457, %v456
        %v459 = vmul.f32 0.5, %v458
        %v460 = vsub.f32 1.5, %v459
        %v461 = vmul.f32 %v456, %v460
        %vm462 = vweird.f32 %v455
        %vm463 = vweird.f32 %v456
        %vm464 = vmor %vm462, %vm463
        %v465 = vsel %vm464, %v456, %v461
        %v466 = vmul.f32 %v453, %v465
        %v467 = vmul.f32 %v454, %v465
        %v468 = vmax.f32 %v466, 0.0
        %v469 = vmax.f32 %v467, 0.0
        %470 = vst [vmem:[%s219] sm:$0xff] %v468
        %471 = vst [vmem:[%s219 + $0x8] sm:$0xff] %v469
        %s472 = sand.u32 %s97, 1
        %s473 = scalar_lea.sflag [#allocation5], %s472
        %s474 = sand.u32 %s97, 1
        %s475 = smul.addr %s474, 16
        %s476 = scalar_lea.vmem [#allocation9], %s475
        // Predicated region
        $region45: #{tpu_custom_call.1} parent=31 // pred_check
          %p477 = pneg %p107
        $region46: #{tpu_custom_call.1} parent=31 // pred_check_branch
          %479 = sbr.rel (%p477) target = $region48
        $region47: #{tpu_custom_call.1} parent=31 // pred_region
          %481 = vsyncadd %s473, 0
          %s482 = smul.addr %s21, 2
          %s483 = smul.addr %s482, 8
          %s484 = scalar_lea.hbm %s3, %s483
          %s486 = sshll.u32 %s476, 4
          %s487 = int_to_ptr.vmem [resolvable:$true] %s486
          %s488 = sshll.u32 %s484, 4
          %s489 = int_to_ptr.hbm [resolvable:$true] %s488
          %491 = dma.vmem_to_hbm [thread:$0]  %s487, 256, %s489, %s473
        $region48: #{tpu_custom_call.1} parent=31 // pred_fallthru
          _
      $region32: #{tpu_custom_call.1} parent=5 // pred_fallthru
        _
      %p492 = scmp.le.s32.totalorder 2, %s16
      // Predicated region
      $region49: #{tpu_custom_call.1} parent=5 // pred_check
        %p493 = pneg %p492
      $region50: #{tpu_custom_call.1} parent=5 // pred_check_branch
        %495 = sbr.rel (%p493) target = $region52
      $region51: #{tpu_custom_call.1} parent=5 // pred_region
        %s496 = ssub.s32 %s16, 2
        // Predicated region
        $region53: #{tpu_custom_call.1} parent=51 // pred_check
          %p497 = pneg %p113
        $region54: #{tpu_custom_call.1} parent=51 // pred_check_branch
          %499 = sbr.rel (%p497) target = $region56
        $region55: #{tpu_custom_call.1} parent=51 // pred_region
          %s500 = sand.u32 %s98, 1
          %s501 = scalar_lea.sflag [#allocation5], %s500
          %s502 = sand.u32 %s98, 1
          %s503 = smul.addr %s502, 16
          %s504 = scalar_lea.vmem [#allocation9], %s503
          %506 = dma.done %s501, 256
        $region56: #{tpu_custom_call.1} parent=51 // pred_fallthru
          _
      $region52: #{tpu_custom_call.1} parent=5 // pred_fallthru
        _
    $region6: #{tpu_custom_call.1} parent=1 // loop_footer
      %s20 = sadd.s32 1, %s16
    $region7: #{tpu_custom_call.1} parent=1 // loop_footer_branch
      %15 = sbr.rel target = $region3
    $region8: #{tpu_custom_call.1} parent=1 // loop_exit
      _
    %507 = vsyncpa [#allocation4], 1
    %s508 = scalar_lea.sflag [#allocation4], 1
    %509 = vsyncpa %s508, 1
    %510 = vsyncpa [#allocation7], 1
    %511 = vsyncpa [#allocation5], 1
    %s512 = scalar_lea.sflag [#allocation5], 1
    %513 = vsyncpa %s512, 1

</llo_original>
